<compile_context>
chip_gen: v5e
topology: v5e:2x2
jax: 0.10.0
libtpu: 0.0.40
codegen_flags: <defaults>
</compile_context>

<pallas_src>
import jax
import jax.numpy as jnp
from jax import lax
from jax.experimental import pallas as pl
from jax.experimental.pallas import tpu as pltpu

EPS = 1e-5

_COMPILER_PARAMS = pltpu.CompilerParams(
    dimension_semantics=("parallel",),
    vmem_limit_bytes=32 * 1024 * 1024,   # safe on v5e/v6e/v7x; tiles here are small
)


# --------------------------------------------------------------------------
# helpers (run inside kernels)
# --------------------------------------------------------------------------
def _shift_prev_next(x):
    """x: (C, L) f32 -> (x[:, l-1], x[:, l+1]) with zero boundaries (padding=1)."""
    C, L = x.shape
    if L % 128 == 0:
        # lane-rotate on the XLU + boundary mask (no relayout copies)
        lane = lax.broadcasted_iota(jnp.int32, (C, L), 1)
        prev = jnp.where(lane == 0, 0.0, pltpu.roll(x, shift=1, axis=1))
        nxt = jnp.where(lane == L - 1, 0.0, pltpu.roll(x, shift=-1, axis=1))
    else:
        # fallback for small / unaligned L: tiny zero-column concat
        zcol = jnp.zeros((C, 1), jnp.float32)
        prev = jnp.concatenate([zcol, x[:, :L - 1]], axis=1)
        nxt = jnp.concatenate([x[:, 1:], zcol], axis=1)
    return prev, nxt


def _conv3(x, w_ref, bias):
    """kernel_size=3, padding=1 conv on one sample.

    x: (Cin, L); w_ref: (3, Cout, Cin) ref (tap-major); bias: (Cout, 1).
    Returns (Cout, L) f32."""
    prev, nxt = _shift_prev_next(x)
    y = jnp.dot(w_ref[1], x, preferred_element_type=jnp.float32)      # center tap
    y = y + jnp.dot(w_ref[0], prev, preferred_element_type=jnp.float32)  # x[l-1]
    y = y + jnp.dot(w_ref[2], nxt, preferred_element_type=jnp.float32)   # x[l+1]
    return y + bias


def _write_stats(stats_ref, y):
    """Per-tile BN partial sums: stats_ref block (1, Cout, 2)."""
    stats_ref[0, :, 0:1] = jnp.sum(y, axis=-1, keepdims=True)
    stats_ref[0, :, 1:2] = jnp.sum(y * y, axis=-1, keepdims=True)


# --------------------------------------------------------------------------
# pass 1: conv1 (k=3) + partial BN1 statistics
# --------------------------------------------------------------------------
def _pass1_kernel(x_ref, w1_ref, b1_ref, y1_ref, stats_ref):
    x = x_ref[0]                                   # (Cin, L)
    y1 = _conv3(x, w1_ref, b1_ref[...])            # (Cout, L)
    y1_ref[0] = y1
    _write_stats(stats_ref, y1)


# --------------------------------------------------------------------------
# pass 2: BN1 (folded affine) + ReLU, conv2 (k=3) + partial BN2 statistics
# --------------------------------------------------------------------------
def _pass2_kernel(y1_ref, w2_ref, vec_ref, y2_ref, stats_ref):
    scale1 = vec_ref[:, 0:1]                       # (Cout, 1)
    shift1 = vec_ref[:, 1:2]
    b2 = vec_ref[:, 2:3]
    h1 = jnp.maximum(y1_ref[0] * scale1 + shift1, 0.0)   # BN1 + ReLU
    y2 = _conv3(h1, w2_ref, b2)                    # (Cout, L)
    y2_ref[0] = y2
    _write_stats(stats_ref, y2)


# --------------------------------------------------------------------------
# pass 3: BN2 + ReLU, recomputed 1x1 shortcut, residual add, final ReLU
# --------------------------------------------------------------------------
def _pass3_kernel(y2_ref, x_ref, ws_ref, vec_ref, out_ref):
    scale2 = vec_ref[:, 0:1]
    shift2 = vec_ref[:, 1:2]
    bs = vec_ref[:, 2:3]
    h2 = jnp.maximum(y2_ref[0] * scale2 + shift2, 0.0)              # BN2 + ReLU
    sc = jnp.dot(ws_ref[...], x_ref[0], preferred_element_type=jnp.float32) + bs
    out_ref[0] = jnp.maximum(h2 + sc, 0.0)


# --------------------------------------------------------------------------
# wrapper
# --------------------------------------------------------------------------
def residual_conv_block_1d(x, params):
    """x: (B, Cin, L) float32, PyTorch NCL layout.  Returns (B, Cout, L).

    params (kernel-friendly layouts):
      w1: (3, Cout, Cin)   conv1 taps (tap-major)       b1: (Cout, 1)
      w2: (3, Cout, Cout)  conv2 taps                   b2: (Cout,)
      ws: (Cout, Cin)      1x1 shortcut weight          bs: (Cout,)
      g1, be1, g2, be2: (Cout,) BatchNorm affine params.
    For Cin == Cout (nn.Identity shortcut) pass ws = I, bs = 0."""
    B, Cin, L = x.shape
    w1 = params["w1"]
    Cout = w1.shape[1]
    n = B * L

    x = x.astype(jnp.float32)

    # ---------------- pass 1 ----------------
    y1, st1 = pl.pallas_call(
        _pass1_kernel,
        grid=(B,),
        in_specs=[
            pl.BlockSpec((1, Cin, L), lambda b: (b, 0, 0)),
            pl.BlockSpec((3, Cout, Cin), lambda b: (0, 0, 0)),
            pl.BlockSpec((Cout, 1), lambda b: (0, 0)),
        ],
        out_specs=[
            pl.BlockSpec((1, Cout, L), lambda b: (b, 0, 0)),
            pl.BlockSpec((1, Cout, 2), lambda b: (b, 0, 0)),
        ],
        out_shape=[
            jax.ShapeDtypeStruct((B, Cout, L), jnp.float32),
            jax.ShapeDtypeStruct((B, Cout, 2), jnp.float32),
        ],
        compiler_params=_COMPILER_PARAMS,
    )(x, w1, params["b1"])

    # fold BN1 (training-mode batch statistics) into a per-channel affine
    s1 = jnp.sum(st1, axis=0)                               # (Cout, 2)
    mean1 = s1[:, 0] / n
    var1 = jnp.maximum(s1[:, 1] / n - mean1 * mean1, 0.0)
    scale1 = params["g1"] * lax.rsqrt(var1 + EPS)
    shift1 = params["be1"] - mean1 * scale1
    vec2 = jnp.stack([scale1, shift1, params["b2"]], axis=-1)   # (Cout, 3)

    # ---------------- pass 2 ----------------
    y2, st2 = pl.pallas_call(
        _pass2_kernel,
        grid=(B,),
        in_specs=[
            pl.BlockSpec((1, Cout, L), lambda b: (b, 0, 0)),
            pl.BlockSpec((3, Cout, Cout), lambda b: (0, 0, 0)),
            pl.BlockSpec((Cout, 3), lambda b: (0, 0)),
        ],
        out_specs=[
            pl.BlockSpec((1, Cout, L), lambda b: (b, 0, 0)),
            pl.BlockSpec((1, Cout, 2), lambda b: (b, 0, 0)),
        ],
        out_shape=[
            jax.ShapeDtypeStruct((B, Cout, L), jnp.float32),
            jax.ShapeDtypeStruct((B, Cout, 2), jnp.float32),
        ],
        compiler_params=_COMPILER_PARAMS,
    )(y1, params["w2"], vec2)

    s2 = jnp.sum(st2, axis=0)
    mean2 = s2[:, 0] / n
    var2 = jnp.maximum(s2[:, 1] / n - mean2 * mean2, 0.0)
    scale2 = params["g2"] * lax.rsqrt(var2 + EPS)
    shift2 = params["be2"] - mean2 * scale2
    vec3 = jnp.stack([scale2, shift2, params["bs"]], axis=-1)   # (Cout, 3)

    # ---------------- pass 3 ----------------
    out = pl.pallas_call(
        _pass3_kernel,
        grid=(B,),
        in_specs=[
            pl.BlockSpec((1, Cout, L), lambda b: (b, 0, 0)),
            pl.BlockSpec((1, Cin, L), lambda b: (b, 0, 0)),
            pl.BlockSpec((Cout, Cin), lambda b: (0, 0)),
            pl.BlockSpec((Cout, 3), lambda b: (0, 0)),
        ],
        out_specs=pl.BlockSpec((1, Cout, L), lambda b: (b, 0, 0)),
        out_shape=jax.ShapeDtypeStruct((B, Cout, L), jnp.float32),
        compiler_params=_COMPILER_PARAMS,
    )(y2, x, params["ws"], vec3)

    return out                                              # already (B, Cout, L)


# --------------------------------------------------------------------------
# pure-JAX reference (PyTorch NCL layout, training-mode BatchNorm)
# --------------------------------------------------------------------------
def reference(x, w1_t, b1, g1, be1, w2_t, b2, g2, be2, ws_t, bs):
    def conv1d(x, w, b, pad):
        y = lax.conv_general_dilated(x, w, (1,), [(pad, pad)],
                                     dimension_numbers=("NCH", "OIH", "NCH"))
        return y + b[None, :, None]

    def bn(y, g, be):
        mean = jnp.mean(y, axis=(0, 2), keepdims=True)
        var = jnp.mean((y - mean) ** 2, axis=(0, 2), keepdims=True)
        return (y - mean) * lax.rsqrt(var + EPS) * g[None, :, None] + be[None, :, None]

    h = jax.nn.relu(bn(conv1d(x, w1_t, b1, 1), g1, be1))
    h = jax.nn.relu(bn(conv1d(h, w2_t, b2, 1), g2, be2))
    sc = conv1d(x, ws_t, bs, 0)
    return jax.nn.relu(h + sc)


if __name__ == "__main__":
    B, Cin, Cout, L = 2, 4, 8, 16

    key = jax.random.PRNGKey(0)
    keys = jax.random.split(key, 11)

    # Deterministic synthetic parameters (PyTorch weight layouts).
    w1_t = 0.2 * jax.random.normal(keys[0], (Cout, Cin, 3), jnp.float32)
    b1 = 0.1 * jax.random.normal(keys[1], (Cout,), jnp.float32)
    g1 = 1.0 + 0.1 * jax.random.normal(keys[2], (Cout,), jnp.float32)
    be1 = 0.1 * jax.random.normal(keys[3], (Cout,), jnp.float32)
    w2_t = 0.2 * jax.random.normal(keys[4], (Cout, Cout, 3), jnp.float32)
    b2 = 0.1 * jax.random.normal(keys[5], (Cout,), jnp.float32)
    g2 = 1.0 + 0.1 * jax.random.normal(keys[6], (Cout,), jnp.float32)
    be2 = 0.1 * jax.random.normal(keys[7], (Cout,), jnp.float32)
    ws_t = 0.2 * jax.random.normal(keys[8], (Cout, Cin, 1), jnp.float32)
    bs = 0.1 * jax.random.normal(keys[9], (Cout,), jnp.float32)

    # Kernel-friendly layouts (tap-major conv weights, per-channel column vectors).
    params = dict(
        w1=jnp.transpose(w1_t, (2, 0, 1)),       # (3, Cout, Cin):  w1[k, co, ci]
        b1=b1[:, None],                          # (Cout, 1)
        g1=g1, be1=be1,
        w2=jnp.transpose(w2_t, (2, 0, 1)),       # (3, Cout, Cout)
        b2=b2, g2=g2, be2=be2,
        ws=ws_t[:, :, 0],                        # (Cout, Cin)
        bs=bs,
    )

    x = jax.random.normal(keys[10], (B, Cin, L), jnp.float32)

    out = jax.block_until_ready(residual_conv_block_1d(x, params))
    ref = jax.block_until_ready(
        reference(x, w1_t, b1, g1, be1, w2_t, b2, g2, be2, ws_t, bs))

    assert out.shape == (B, Cout, L)
    max_err = float(jnp.max(jnp.abs(out - ref)))
    assert jnp.allclose(out, ref, atol=2e-4, rtol=2e-4), max_err
    print("KERNEL_OK")
</pallas_src>

<mosaic_0001>
module attributes {stable_mosaic.version = 11 : i64} {
  func.func @_pass1_kernel(%arg0: i32, %arg1: memref<1x4x16xf32, #tpu.memory_space<vmem>>, %arg2: memref<3x8x4xf32, #tpu.memory_space<vmem>>, %arg3: memref<8x1xf32, #tpu.memory_space<vmem>>, %arg4: memref<1x8x16xf32, #tpu.memory_space<vmem>>, %arg5: memref<1x8x2xf32, #tpu.memory_space<vmem>>) attributes {dimension_semantics = [#tpu.dimension_semantics<parallel>], iteration_bounds = array<i64: 2>, scalar_prefetch = 0 : i64, scratch_operands = 0 : i64, tpu.core_type = #tpu.core_type<tc>, window_params = [{transform_indices = @transform_0, window_bounds = array<i64: 1, 4, 16>}, {pipeline_mode = #tpu.pipeline_mode<synchronous>, transform_indices = @transform_1, window_bounds = array<i64: 3, 8, 4>}, {pipeline_mode = #tpu.pipeline_mode<synchronous>, transform_indices = @transform_2, window_bounds = array<i64: 8, 1>}, {transform_indices = @transform_3, window_bounds = array<i64: 1, 8, 16>}, {transform_indices = @transform_4, window_bounds = array<i64: 1, 8, 2>}]} {
    %c0 = arith.constant 0 : index
    %c0_0 = arith.constant 0 : index
    %c0_1 = arith.constant 0 : index
    %0 = vector.load %arg1[%c0, %c0_0, %c0_1] : memref<1x4x16xf32, #tpu.memory_space<vmem>>, vector<1x4x16xf32>
    %1 = vector.shape_cast %0 : vector<1x4x16xf32> to vector<4x16xf32>
    %c0_2 = arith.constant 0 : index
    %c0_3 = arith.constant 0 : index
    %2 = vector.load %arg3[%c0_2, %c0_3] : memref<8x1xf32, #tpu.memory_space<vmem>>, vector<8x1xf32>
    %cst = arith.constant 0.000000e+00 : f32
    %3 = vector.broadcast %cst : f32 to vector<4x1xf32>
    %4 = vector.extract_strided_slice %1 {offsets = [0, 0], sizes = [4, 15], strides = [1, 1]} : vector<4x16xf32> to vector<4x15xf32>
    %5 = tpu.concatenate %3, %4 in 1 : vector<4x1xf32>, vector<4x15xf32> -> vector<4x16xf32>
    %6 = vector.extract_strided_slice %1 {offsets = [0, 1], sizes = [4, 15], strides = [1, 1]} : vector<4x16xf32> to vector<4x15xf32>
    %7 = tpu.concatenate %6, %3 in 1 : vector<4x15xf32>, vector<4x1xf32> -> vector<4x16xf32>
    %c1 = arith.constant 1 : index
    %c0_4 = arith.constant 0 : index
    %c0_5 = arith.constant 0 : index
    %8 = vector.load %arg2[%c1, %c0_4, %c0_5] : memref<3x8x4xf32, #tpu.memory_space<vmem>>, vector<1x8x4xf32>
    %9 = vector.shape_cast %8 : vector<1x8x4xf32> to vector<8x4xf32>
    %cst_6 = arith.constant dense<0.000000e+00> : vector<8x16xf32>
    %10 = tpu.matmul %9, %1, %cst_6 {dimension_numbers = #tpu.dot_dimension_numbers<[1], [0], [0], [1], [0, 0, 1, 1], [], []>} : vector<8x4xf32>, vector<4x16xf32>, vector<8x16xf32> -> vector<8x16xf32>
    %c0_7 = arith.constant 0 : index
    %c0_8 = arith.constant 0 : index
    %c0_9 = arith.constant 0 : index
    %11 = vector.load %arg2[%c0_7, %c0_8, %c0_9] : memref<3x8x4xf32, #tpu.memory_space<vmem>>, vector<1x8x4xf32>
    %12 = vector.shape_cast %11 : vector<1x8x4xf32> to vector<8x4xf32>
    %cst_10 = arith.constant dense<0.000000e+00> : vector<8x16xf32>
    %13 = tpu.matmul %12, %5, %cst_10 {dimension_numbers = #tpu.dot_dimension_numbers<[1], [0], [0], [1], [0, 0, 1, 1], [], []>} : vector<8x4xf32>, vector<4x16xf32>, vector<8x16xf32> -> vector<8x16xf32>
    %14 = arith.addf %10, %13 : vector<8x16xf32>
    %c2 = arith.constant 2 : index
    %c0_11 = arith.constant 0 : index
    %c0_12 = arith.constant 0 : index
    %15 = vector.load %arg2[%c2, %c0_11, %c0_12] : memref<3x8x4xf32, #tpu.memory_space<vmem>>, vector<1x8x4xf32>
    %16 = vector.shape_cast %15 : vector<1x8x4xf32> to vector<8x4xf32>
    %cst_13 = arith.constant dense<0.000000e+00> : vector<8x16xf32>
    %17 = tpu.matmul %16, %7, %cst_13 {dimension_numbers = #tpu.dot_dimension_numbers<[1], [0], [0], [1], [0, 0, 1, 1], [], []>} : vector<8x4xf32>, vector<4x16xf32>, vector<8x16xf32> -> vector<8x16xf32>
    %18 = arith.addf %14, %17 : vector<8x16xf32>
    %19 = vector.broadcast %2 : vector<8x1xf32> to vector<8x16xf32>
    %20 = arith.addf %18, %19 : vector<8x16xf32>
    %c0_14 = arith.constant 0 : index
    %c0_15 = arith.constant 0 : index
    %c0_16 = arith.constant 0 : index
    %21 = vector.load %arg4[%c0_14, %c0_15, %c0_16] : memref<1x8x16xf32, #tpu.memory_space<vmem>>, vector<1x8x16xf32>
    %22 = vector.shape_cast %21 : vector<1x8x16xf32> to vector<8x16xf32>
    %23 = vector.shape_cast %20 : vector<8x16xf32> to vector<1x8x16xf32>
    tpu.vector_store %arg4[%c0_14, %c0_15, %c0_16], %23 {strides = array<i32>} : memref<1x8x16xf32, #tpu.memory_space<vmem>>, vector<1x8x16xf32>,
    %cst_17 = arith.constant dense<0.000000e+00> : vector<8xf32>
    %24 = vector.multi_reduction <add>, %20, %cst_17 [1] : vector<8x16xf32> to vector<8xf32>
    %25 = vector.shape_cast %24 : vector<8xf32> to vector<8x1xf32>
    %c0_18 = arith.constant 0 : index
    %c0_19 = arith.constant 0 : index
    %c0_20 = arith.constant 0 : index
    %26 = vector.load %arg5[%c0_18, %c0_19, %c0_20] : memref<1x8x2xf32, #tpu.memory_space<vmem>>, vector<1x8x1xf32>
    %27 = vector.shape_cast %26 : vector<1x8x1xf32> to vector<8x1xf32>
    %28 = vector.shape_cast %25 : vector<8x1xf32> to vector<1x8x1xf32>
    tpu.vector_store %arg5[%c0_18, %c0_19, %c0_20], %28 {strides = array<i32>} : memref<1x8x2xf32, #tpu.memory_space<vmem>>, vector<1x8x1xf32>,
    %29 = arith.mulf %20, %20 : vector<8x16xf32>
    %cst_21 = arith.constant dense<0.000000e+00> : vector<8xf32>
    %30 = vector.multi_reduction <add>, %29, %cst_21 [1] : vector<8x16xf32> to vector<8xf32>
    %31 = vector.shape_cast %30 : vector<8xf32> to vector<8x1xf32>
    %c0_22 = arith.constant 0 : index
    %c0_23 = arith.constant 0 : index
    %c1_24 = arith.constant 1 : index
    %32 = vector.load %arg5[%c0_22, %c0_23, %c1_24] : memref<1x8x2xf32, #tpu.memory_space<vmem>>, vector<1x8x1xf32>
    %33 = vector.shape_cast %32 : vector<1x8x1xf32> to vector<8x1xf32>
    %34 = vector.shape_cast %31 : vector<8x1xf32> to vector<1x8x1xf32>
    tpu.vector_store %arg5[%c0_22, %c0_23, %c1_24], %34 {strides = array<i32>} : memref<1x8x2xf32, #tpu.memory_space<vmem>>, vector<1x8x1xf32>,
    return
  }
  func.func @transform_0(%arg0: i32) -> (i32, i32, i32) {
    %c0_i32 = arith.constant 0 : i32
    %c0_i32_0 = arith.constant 0 : i32
    %c0_i32_1 = arith.constant 0 : i32
    return %arg0, %c0_i32, %c0_i32_0 : i32, i32, i32
  }
  func.func @transform_1(%arg0: i32) -> (i32, i32, i32) {
    %c0_i32 = arith.constant 0 : i32
    %c0_i32_0 = arith.constant 0 : i32
    %c0_i32_1 = arith.constant 0 : i32
    %c0_i32_2 = arith.constant 0 : i32
    return %c0_i32, %c0_i32_0, %c0_i32_1 : i32, i32, i32
  }
  func.func @transform_2(%arg0: i32) -> (i32, i32) {
    %c0_i32 = arith.constant 0 : i32
    %c0_i32_0 = arith.constant 0 : i32
    %c0_i32_1 = arith.constant 0 : i32
    return %c0_i32, %c0_i32_0 : i32, i32
  }
  func.func @transform_3(%arg0: i32) -> (i32, i32, i32) {
    %c0_i32 = arith.constant 0 : i32
    %c0_i32_0 = arith.constant 0 : i32
    %c0_i32_1 = arith.constant 0 : i32
    return %arg0, %c0_i32, %c0_i32_0 : i32, i32, i32
  }
  func.func @transform_4(%arg0: i32) -> (i32, i32, i32) {
    %c0_i32 = arith.constant 0 : i32
    %c0_i32_0 = arith.constant 0 : i32
    %c0_i32_1 = arith.constant 0 : i32
    return %arg0, %c0_i32, %c0_i32_0 : i32, i32, i32
  }
}

</mosaic_0001>

<llo_original>
// kernel: tpu_custom_call.1
$region0: #{tpu_custom_call.1}
  #allocation0 [shape = 'u32[]', space=smem, size = 0x4, offset = 0x4, fixed_abs, tag = 'smem constant byte address 0x4 - core index']
  #allocation1 [shape = 'u32[72,128]{1,0:T(1,128)}', space=vmem, size = 0x9000, scoped, tag = 'internal scratch']
  %s0 = inlined_call_operand.vmem [shape: f32[2,4,16], index: 0, kind: input, shape index: {}]
  %s1 = inlined_call_operand.vmem [shape: f32[3,8,4], index: 1, kind: input, shape index: {}]
  %s2 = inlined_call_operand.vmem [shape: f32[8,1], index: 2, kind: input, shape index: {}]
  %s3 = inlined_call_operand.hbm [shape: f32[2,8,16], index: 3, kind: output, shape index: {0}]
  %s4 = inlined_call_operand.vmem [shape: f32[2,8,2], index: 4, kind: output, shape index: {1}]
  %5 = xla_tuple %s3, %s4
  %s6 = sld [smem:[#allocation0]]
  $region53: #{tpu_custom_call.1} parent=0
    _
  %s8 = ssub.s32 1, %s6
  %s9 = scalar_select 0, %s8, %s6
  $region1: #{tpu_custom_call.1} parent=0
    #allocation2 [shape = 'u8[8192]{0}', space=vmem, size = 0x2000, scoped, tag = 'output window, operand 0']
    #allocation3 [shape = 's32[2]{0}', space=sflag, size = 0x8, scoped, tag = 'scoped memory for tpu_custom_call.1']
    %10 = vsyncpa [#allocation3], 0
    %s11 = scalar_lea.sflag [#allocation3], 1
    %12 = vsyncpa %s11, 0
    loop: start=0, step=1, limit=4
    $region2: #{tpu_custom_call.1} parent=1 // loop_pre_header
      _
    $region3: #{tpu_custom_call.1} parent=1 // loop_header
      %s14 = sphi 0, %s18
      %p15 = scmp.ge.s32.totalorder %s14, 4
      %s24 = sphi 0, %s26
      %s27 = sphi 0, %s24
      %s28 = sphi 0, %s27
      %s44 = sphi 0, %s28
      %s48 = sphi 0, %s48
      %s50 = sphi 0, %s48
      %s51 = sphi 0, %s50
      %s65 = sphi 0, %s51
      %s69 = sphi 0, %s69
      %s71 = sphi 0, %s69
      %s72 = sphi 0, %s71
      %s86 = sphi 0, %s72
      %s92 = sphi 0, %s94
      %s95 = sphi 0, %s92
      %s96 = sphi 0, %s95
      %s112 = sphi 0, %s96
      %s118 = sphi 0, %s120
      %s121 = sphi 0, %s118
      %s122 = sphi 0, %s121
      %s138 = sphi 0, %s122
    $region4: #{tpu_custom_call.1} parent=1 // loop_header_branch
      %17 = sbr.rel (%p15) target = $region8
    $region5: #{tpu_custom_call.1} parent=1 // loop_body
      %s19 = ssub.s32 %s14, 1
      %s20 = ssub.s32 %s14, 2
      %s21 = sadd.s32 %s14, 1
      %s22 = ssub.s32 %s14, %s21
      %p23 = scmp.eq.s32.totalorder %s22, 0
      %s25 = sadd.s32 %s24, 1
      %s26 = scalar_select %p23, %s24, %s25
      %p29 = pneg %p23
      %p30 = scmp.eq.s32.totalorder %s14, 1
      %p31 = por %p29, %p30
      %p32 = scmp.ne.s32.totalorder %s24, %s27
      %p33 = scmp.eq.s32.totalorder %s14, 0
      %p34 = por %p32, %p33
      %p35 = scmp.ne.s32.totalorder %s24, %s27
      %p36 = scmp.eq.s32.totalorder %s19, 1
      %p37 = por %p35, %p36
      %p38 = scmp.ne.s32.totalorder %s27, %s28
      %p39 = scmp.eq.s32.totalorder %s19, 0
      %p40 = por %p38, %p39
      %p41 = scmp.ne.s32.totalorder %s27, %s28
      %p42 = scmp.eq.s32.totalorder %s20, 1
      %p43 = por %p41, %p42
      %p45 = scmp.ne.s32.totalorder %s28, %s44
      %p46 = scmp.eq.s32.totalorder %s20, 0
      %p47 = por %p45, %p46
      %s49 = sadd.s32 %s48, 1
      %p52 = scmp.eq.s32.totalorder %s14, 1
      %p53 = scmp.ne.s32.totalorder %s48, %s50
      %p54 = scmp.eq.s32.totalorder %s14, 0
      %p55 = por %p53, %p54
      %p56 = scmp.ne.s32.totalorder %s48, %s50
      %p57 = scmp.eq.s32.totalorder %s19, 1
      %p58 = por %p56, %p57
      %p59 = scmp.ne.s32.totalorder %s50, %s51
      %p60 = scmp.eq.s32.totalorder %s19, 0
      %p61 = por %p59, %p60
      %p62 = scmp.ne.s32.totalorder %s50, %s51
      %p63 = scmp.eq.s32.totalorder %s20, 1
      %p64 = por %p62, %p63
      %p66 = scmp.ne.s32.totalorder %s51, %s65
      %p67 = scmp.eq.s32.totalorder %s20, 0
      %p68 = por %p66, %p67
      %s70 = sadd.s32 %s69, 1
      %p73 = scmp.eq.s32.totalorder %s14, 1
      %p74 = scmp.ne.s32.totalorder %s69, %s71
      %p75 = scmp.eq.s32.totalorder %s14, 0
      %p76 = por %p74, %p75
      %p77 = scmp.ne.s32.totalorder %s69, %s71
      %p78 = scmp.eq.s32.totalorder %s19, 1
      %p79 = por %p77, %p78
      %p80 = scmp.ne.s32.totalorder %s71, %s72
      %p81 = scmp.eq.s32.totalorder %s19, 0
      %p82 = por %p80, %p81
      %p83 = scmp.ne.s32.totalorder %s71, %s72
      %p84 = scmp.eq.s32.totalorder %s20, 1
      %p85 = por %p83, %p84
      %p87 = scmp.ne.s32.totalorder %s72, %s86
      %p88 = scmp.eq.s32.totalorder %s20, 0
      %p89 = por %p87, %p88
      %s90 = ssub.s32 %s14, %s21
      %p91 = scmp.eq.s32.totalorder %s90, 0
      %s93 = sadd.s32 %s92, 1
      %s94 = scalar_select %p91, %s92, %s93
      %p97 = pneg %p91
      %p98 = scmp.eq.s32.totalorder %s14, 1
      %p99 = por %p97, %p98
      %p100 = scmp.ne.s32.totalorder %s92, %s95
      %p101 = scmp.eq.s32.totalorder %s14, 0
      %p102 = por %p100, %p101
      %p103 = scmp.ne.s32.totalorder %s92, %s95
      %p104 = scmp.eq.s32.totalorder %s19, 1
      %p105 = por %p103, %p104
      %p106 = scmp.ne.s32.totalorder %s95, %s96
      %p107 = scmp.eq.s32.totalorder %s19, 0
      %p108 = por %p106, %p107
      %p109 = scmp.ne.s32.totalorder %s95, %s96
      %p110 = scmp.eq.s32.totalorder %s20, 1
      %p111 = por %p109, %p110
      %p113 = scmp.ne.s32.totalorder %s96, %s112
      %p114 = scmp.eq.s32.totalorder %s20, 0
      %p115 = por %p113, %p114
      %s116 = ssub.s32 %s14, %s21
      %p117 = scmp.eq.s32.totalorder %s116, 0
      %s119 = sadd.s32 %s118, 1
      %s120 = scalar_select %p117, %s118, %s119
      %p123 = pneg %p117
      %p124 = scmp.eq.s32.totalorder %s14, 1
      %p125 = por %p123, %p124
      %p126 = scmp.ne.s32.totalorder %s118, %s121
      %p127 = scmp.eq.s32.totalorder %s14, 0
      %p128 = por %p126, %p127
      %p129 = scmp.ne.s32.totalorder %s118, %s121
      %p130 = scmp.eq.s32.totalorder %s19, 1
      %p131 = por %p129, %p130
      %p132 = scmp.ne.s32.totalorder %s121, %s122
      %p133 = scmp.eq.s32.totalorder %s19, 0
      %p134 = por %p132, %p133
      %p135 = scmp.ne.s32.totalorder %s121, %s122
      %p136 = scmp.eq.s32.totalorder %s20, 1
      %p137 = por %p135, %p136
      %p139 = scmp.ne.s32.totalorder %s122, %s138
      %p140 = scmp.eq.s32.totalorder %s20, 0
      %p141 = por %p139, %p140
      %p142 = scmp.le.s32.totalorder 1, %s14
      %p143 = scmp.lt.s32.totalorder %s14, 3
      %p144 = pnand %p142, %p143
      %p145 = pneg %p144
      // Predicated region
      $region9: #{tpu_custom_call.1} parent=5 // pred_check
        _
      $region10: #{tpu_custom_call.1} parent=5 // pred_check_branch
        %147 = sbr.rel (%p144) target = $region12
      $region11: #{tpu_custom_call.1} parent=5 // pred_region
        %s148 = ssub.s32 %s14, 1
        // Predicated region
        $region13: #{tpu_custom_call.1} parent=11 // pred_check
          %p149 = pneg %p61
        $region14: #{tpu_custom_call.1} parent=11 // pred_check_branch
          %151 = sbr.rel (%p149) target = $region16
        $region15: #{tpu_custom_call.1} parent=11 // pred_region
          _
        $region16: #{tpu_custom_call.1} parent=11 // pred_fallthru
          _
        // Predicated region
        $region17: #{tpu_custom_call.1} parent=11 // pred_check
          %p152 = pneg %p82
        $region18: #{tpu_custom_call.1} parent=11 // pred_check_branch
          %154 = sbr.rel (%p152) target = $region20
        $region19: #{tpu_custom_call.1} parent=11 // pred_region
          _
        $region20: #{tpu_custom_call.1} parent=11 // pred_fallthru
          _
      $region12: #{tpu_custom_call.1} parent=5 // pred_fallthru
        _
      %p155 = scmp.lt.s32.totalorder %s14, 2
      // Predicated region
      $region21: #{tpu_custom_call.1} parent=5 // pred_check
        %p156 = pneg %p155
      $region22: #{tpu_custom_call.1} parent=5 // pred_check_branch
        %158 = sbr.rel (%p156) target = $region24
      $region23: #{tpu_custom_call.1} parent=5 // pred_region
        // Predicated region
        $region25: #{tpu_custom_call.1} parent=23 // pred_check
          %p159 = pneg %p34
        $region26: #{tpu_custom_call.1} parent=23 // pred_check_branch
          %161 = sbr.rel (%p159) target = $region28
        $region27: #{tpu_custom_call.1} parent=23 // pred_region
          %p162 = scmp.lt.s32.totalorder %s14, 1
          %s163 = scalar_select %p162, %s14, 1
          %s164 = smul.addr %s163, 4
          %s165 = scalar_lea.vmem %s0, %s164
        $region28: #{tpu_custom_call.1} parent=23 // pred_fallthru
          _
      $region24: #{tpu_custom_call.1} parent=5 // pred_fallthru
        _
      %p166 = scmp.le.s32.totalorder 1, %s14
      %p167 = scmp.lt.s32.totalorder %s14, 3
      %p168 = pnand %p166, %p167
      %p169 = pneg %p168
      // Predicated region
      $region29: #{tpu_custom_call.1} parent=5 // pred_check
        _
      $region30: #{tpu_custom_call.1} parent=5 // pred_check_branch
        %171 = sbr.rel (%p168) target = $region32
      $region31: #{tpu_custom_call.1} parent=5 // pred_region
        %s172 = ssub.s32 %s14, 1
        %p173 = scmp.lt.s32.totalorder %s19, 1
        %s174 = scalar_select %p173, %s19, 1
        %s175 = smul.addr %s174, 4
        %s176 = scalar_lea.vmem %s0, %s175
        %p177 = pneg %p40
        %p178 = pneg %p37
        %p179 = pneg %p61
        %p180 = pneg %p58
        %p181 = pneg %p82
        %p182 = pneg %p79
        %p183 = pneg %p108
        %p184 = pneg %p105
        %s185 = sand.u32 %s95, 1
        %s186 = scalar_lea.sflag [#allocation3], %s185
        %s187 = sand.u32 %s95, 1
        %s188 = smul.addr %s187, 8
        %s189 = scalar_lea.vmem [#allocation2], %s188
        %p190 = pneg %p134
        %p191 = pneg %p131
        %p192 = scmp.lt.s32.totalorder %s19, 1
        %s193 = scalar_select %p192, %s19, 1
        %s194 = smul.addr %s193, 8
        %s195 = scalar_lea.vmem %s4, %s194
        %p196 = scmp.lt.s32.totalorder %s19, 1
        %s197 = scalar_select %p196, %s19, 1
        %s198 = smul.addr %s197, 4
        %s199 = scalar_lea.vmem %s0, %s198
        %p200 = scmp.lt.s32.totalorder %s19, 1
        %s201 = scalar_select %p200, %s19, 1
        %s202 = smul.addr %s201, 8
        %s203 = scalar_lea.vmem %s4, %s202
        %v204 = vld [vmem:[%s199] sm:$0xf]
        %v205 = vld [vmem:[%s2] sm:$0xff]
        %207 = vrot.lane.b32.xlu0 %v204, 1
        %v208 = vpop.permute.xlu0 %207
        %vm210 = vcmask 7168
        %v211 = vsel %vm210, 0.0, %v208
        %212 = vrot.lane.b32.xlu0 %v204, 127
        %v213 = vpop.permute.xlu0 %212
        %vm215 = vcmask 121856
        %v216 = vsel %vm215, %v213, 0.0
        %s217 = scalar_lea.vmem %s1, 8
        %v218 = vld [vmem:[%s217] sm:$0xff]
        %v219 = vld [vmem:[%s1] sm:$0xff]
        %vm220 = vcmask 31744
        %v222 = vsel %vm220, %v219, 0
        %vm224 = vcmask 1043456
        %v226 = vsel %vm224, %v211, 0
        %228 = vmatpush.msra.mxu0 0.0
        %229 = vmatpush.msra.mxu0 0.0
        %230 = vmatpush.msra.mxu0 0.0
        %231 = vmatpush.msra.mxu0 0.0
        %232 = vmatpush.msra.mxu0 0.0
        %233 = vmatpush.msra.mxu0 0.0
        %234 = vmatpush.msra.mxu0 0.0
        %235 = vmatpush.msra.mxu0 0.0
        %236 = vmatpush.msra.mxu0 0.0
        %237 = vmatpush.msra.mxu0 0.0
        %238 = vmatpush.msra.mxu0 0.0
        %239 = vmatpush.msra.mxu0 0.0
        %240 = vmatpush.msra.mxu0 0.0
        %241 = vmatpush.msra.mxu0 0.0
        %242 = vmatpush.msra.mxu0 0.0
        %243 = vmatpush.msra.mxu0 %v226
        %244 = vmatmul.f32.gmra.mxu0 %v222
        %v245 = vpop.f32.mrf.mxu0
        %v246 = vadd.f32 0.0, %v245
        %247 = vdwg.mxu0
        %v249 = vsel %vm220, %v218, 0
        %v251 = vsel %vm224, %v204, 0
        %253 = vmatpush.msra.mxu0 0.0
        %254 = vmatpush.msra.mxu0 0.0
        %255 = vmatpush.msra.mxu0 0.0
        %256 = vmatpush.msra.mxu0 0.0
        %257 = vmatpush.msra.mxu0 0.0
        %258 = vmatpush.msra.mxu0 0.0
        %259 = vmatpush.msra.mxu0 0.0
        %260 = vmatpush.msra.mxu0 0.0
        %261 = vmatpush.msra.mxu0 0.0
        %262 = vmatpush.msra.mxu0 0.0
        %263 = vmatpush.msra.mxu0 0.0
        %264 = vmatpush.msra.mxu0 0.0
        %265 = vmatpush.msra.mxu0 0.0
        %266 = vmatpush.msra.mxu0 0.0
        %267 = vmatpush.msra.mxu0 0.0
        %268 = vmatpush.msra.mxu0 %v251
        %269 = vmatmul.f32.gmra.mxu0 %v249
        %v270 = vpop.f32.mrf.mxu0
        %v271 = vadd.f32 %v246, %v270
        %272 = vdwg.mxu0
        %s273 = scalar_lea.vmem %s1, 16
        %v274 = vld [vmem:[%s273] sm:$0xff]
        %v276 = vsel %vm220, %v274, 0
        %v279 = vsel %vm224, %v216, 0
        %281 = vmatpush.msra.mxu0 0.0
        %282 = vmatpush.msra.mxu0 0.0
        %283 = vmatpush.msra.mxu0 0.0
        %284 = vmatpush.msra.mxu0 0.0
        %285 = vmatpush.msra.mxu0 0.0
        %286 = vmatpush.msra.mxu0 0.0
        %287 = vmatpush.msra.mxu0 0.0
        %288 = vmatpush.msra.mxu0 0.0
        %289 = vmatpush.msra.mxu0 0.0
        %290 = vmatpush.msra.mxu0 0.0
        %291 = vmatpush.msra.mxu0 0.0
        %292 = vmatpush.msra.mxu0 0.0
        %293 = vmatpush.msra.mxu0 0.0
        %294 = vmatpush.msra.mxu0 0.0
        %295 = vmatpush.msra.mxu0 0.0
        %296 = vmatpush.msra.mxu0 %v279
        %297 = vmatmul.f32.gmra.mxu0 %v276
        %v298 = vpop.f32.mrf.mxu0
        %v299 = vadd.f32 0.0, %v298
        %300 = vdwg.mxu0
        %v301 = vadd.f32 %v271, %v299
        %303 = vset.pattern.permute.xlu0 0
        %304 = vperm.xlu0 %303, %v205
        %v305 = vpop.permute.xlu0 %304
        %v307 = vadd.f32 %v301, %v305
        %vm308 = vcmask 130048
        %309 = vst.msk [vmem:[%s189] sm:$0xff] %vm308, %v307
        %v310 = vsel %vm308, %v307, 0.0
        %311 = vadd.xlane.f32.xlu0 %v310
        %v312 = vpop.xlane.xlu0 %311
        %313 = vst.msk [vmem:[%s203] sm:$0xff] %vm210, %v312
        %v314 = vmul.f32 %v307, %v307
        %v315 = vsel %vm308, %v314, 0.0
        %316 = vadd.xlane.f32.xlu0 %v315
        %v317 = vpop.xlane.xlu0 %316
        %vm318 = vcmask 15368
        %319 = vst.msk [vmem:[%s203] sm:$0xff] %vm318, %v317
        %s320 = sand.u32 %s95, 1
        %s321 = scalar_lea.sflag [#allocation3], %s320
        %s322 = sand.u32 %s95, 1
        %s323 = smul.addr %s322, 8
        %s324 = scalar_lea.vmem [#allocation2], %s323
        %p325 = scmp.lt.s32.totalorder %s19, 1
        %s326 = scalar_select %p325, %s19, 1
        %s327 = smul.addr %s326, 8
        %s328 = scalar_lea.vmem %s4, %s327
        // Predicated region
        $region33: #{tpu_custom_call.1} parent=31 // pred_check
          %p329 = pneg %p105
        $region34: #{tpu_custom_call.1} parent=31 // pred_check_branch
          %331 = sbr.rel (%p329) target = $region36
        $region35: #{tpu_custom_call.1} parent=31 // pred_region
          %333 = vsyncadd %s321, 0
          %s334 = smul.addr %s19, 8
          %s335 = scalar_lea.hbm %s3, %s334
          %s337 = sshll.u32 %s324, 4
          %s338 = int_to_ptr.vmem [resolvable:$true] %s337
          %s339 = sshll.u32 %s335, 4
          %s340 = int_to_ptr.hbm [resolvable:$true] %s339
          %342 = dma.vmem_to_hbm [thread:$0]  %s338, 128, %s340, %s321
        $region36: #{tpu_custom_call.1} parent=31 // pred_fallthru
          _
        // Predicated region
        $region37: #{tpu_custom_call.1} parent=31 // pred_check
          %p343 = pneg %p131
        $region38: #{tpu_custom_call.1} parent=31 // pred_check_branch
          %345 = sbr.rel (%p343) target = $region40
        $region39: #{tpu_custom_call.1} parent=31 // pred_region
          _
        $region40: #{tpu_custom_call.1} parent=31 // pred_fallthru
          _
      $region32: #{tpu_custom_call.1} parent=5 // pred_fallthru
        _
      %p346 = scmp.le.s32.totalorder 2, %s14
      // Predicated region
      $region41: #{tpu_custom_call.1} parent=5 // pred_check
        %p347 = pneg %p346
      $region42: #{tpu_custom_call.1} parent=5 // pred_check_branch
        %349 = sbr.rel (%p347) target = $region44
      $region43: #{tpu_custom_call.1} parent=5 // pred_region
        %s350 = ssub.s32 %s14, 2
        // Predicated region
        $region45: #{tpu_custom_call.1} parent=43 // pred_check
          %p351 = pneg %p111
        $region46: #{tpu_custom_call.1} parent=43 // pred_check_branch
          %353 = sbr.rel (%p351) target = $region48
        $region47: #{tpu_custom_call.1} parent=43 // pred_region
          %s354 = sand.u32 %s96, 1
          %s355 = scalar_lea.sflag [#allocation3], %s354
          %s356 = sand.u32 %s96, 1
          %s357 = smul.addr %s356, 8
          %s358 = scalar_lea.vmem [#allocation2], %s357
          %360 = dma.done %s355, 128
        $region48: #{tpu_custom_call.1} parent=43 // pred_fallthru
          _
        // Predicated region
        $region49: #{tpu_custom_call.1} parent=43 // pred_check
          %p361 = pneg %p137
        $region50: #{tpu_custom_call.1} parent=43 // pred_check_branch
          %363 = sbr.rel (%p361) target = $region52
        $region51: #{tpu_custom_call.1} parent=43 // pred_region
          %p364 = scmp.lt.s32.totalorder %s20, 1
          %s365 = scalar_select %p364, %s20, 1
          %s366 = smul.addr %s365, 8
          %s367 = scalar_lea.vmem %s4, %s366
        $region52: #{tpu_custom_call.1} parent=43 // pred_fallthru
          _
      $region44: #{tpu_custom_call.1} parent=5 // pred_fallthru
        _
    $region6: #{tpu_custom_call.1} parent=1 // loop_footer
      %s18 = sadd.s32 1, %s14
    $region7: #{tpu_custom_call.1} parent=1 // loop_footer_branch
      %13 = sbr.rel target = $region3
    $region8: #{tpu_custom_call.1} parent=1 // loop_exit
      _
    %368 = vsyncpa [#allocation3], 1
    %s369 = scalar_lea.sflag [#allocation3], 1
    %370 = vsyncpa %s369, 1

</llo_original>
